<compile_context>
chip_gen: v5e
topology: v5e:2x2
jax: 0.10.0
libtpu: 0.0.40
codegen_flags: <defaults>
</compile_context>

<pallas_src>
import functools
import math

import jax
import jax.numpy as jnp
from jax import lax
from jax.experimental import pallas as pl
from jax.experimental.pallas import tpu as pltpu


def rnn_seq_kernel(x_ref, h0_ref, wx_ref, wh_ref, b_ref, out_ref, hfin_ref,
                   *, num_valid_out):
    """One grid step == TT RNN timesteps.

    x_ref   : (TT, B_pad, I)       inputs for this time block
    h0_ref  : (B_pad, H_pad)       initial hidden (same block every step)
    wx_ref  : (I, H_pad+O_pad)     input  -> (hidden|output) merged weights (VMEM resident)
    wh_ref  : (H_pad, H_pad+O_pad) hidden -> (hidden|output) merged weights (VMEM resident)
    b_ref   : (1, H_pad+O_pad)     merged bias (padded lanes are zero)
    out_ref : (TT, B_pad, O_pad)   lane-dense log-softmax outputs
    hfin_ref: (B_pad, H_pad)       hidden carry across grid steps / final hidden
    """
    TT = out_ref.shape[0]
    B_pad = hfin_ref.shape[0]
    H_pad = hfin_ref.shape[1]
    O_pad = out_ref.shape[2]

    step = pl.program_id(0)

    @pl.when(step == 0)
    def _():
        hfin_ref[...] = h0_ref[...]

    # Resident operands + lane mask, hoisted out of the time loop.
    wx = wx_ref[...]
    wh = wh_ref[...]
    b = b_ref[...]
    lane_ok = lax.broadcasted_iota(jnp.int32, (B_pad, O_pad), 1) < num_valid_out
    neg_big = jnp.full((B_pad, O_pad), -1e30, jnp.float32)

    def body(tt, h):
        x_t = x_ref[tt]                                        # (B_pad, I)
        # One merged (B_pad, H_pad+O_pad) projection per operand: no (x|h) concat,
        # no second under-filled MXU pass per layer.
        proj = (jnp.dot(x_t, wx, preferred_element_type=jnp.float32)
                + jnp.dot(h, wh, preferred_element_type=jnp.float32)
                + b)

        h_new = proj[:, :H_pad]                                # tile-aligned slice
        logits = jnp.where(lane_ok, proj[:, H_pad:], neg_big)  # mask padded lanes

        # numerically stable LogSoftmax over the feature axis
        m = jnp.max(logits, axis=-1, keepdims=True)
        shifted = logits - m
        lse = jnp.log(jnp.sum(jnp.exp(shifted), axis=-1, keepdims=True))

        out_ref[tt] = shifted - lse                            # lane-dense store
        return h_new

    h_final = lax.fori_loop(0, TT, body, hfin_ref[...], unroll=True)
    hfin_ref[...] = h_final


def rnn_sequence_forward(xs, h0, wh_full, bh, wo_full, bo, *, block_t=None):
    """Run the RNN cell over a whole sequence in a single fused kernel.

    xs: (T, B, I), h0: (B, H).
    wh_full: (I+H, H), bh: (1, H), wo_full: (I+H, O), bo: (1, O)
      (these are the nn.Linear weights, stored transposed vs. PyTorch).
    Returns (log-probs (T, B, O), final hidden (B, H)).
    """
    T, B, I = xs.shape
    H = wh_full.shape[1]
    O = wo_full.shape[1]

    # Padding: batch to sublane multiple of 8; H and O to lane multiples of 128
    # so the merged-projection split and the output stores are tile-aligned.
    B_pad = max(8, ((B + 7) // 8) * 8)
    H_pad = max(128, ((H + 127) // 128) * 128)
    O_pad = max(128, ((O + 127) // 128) * 128)
    N_pad = H_pad + O_pad

    TT = T if block_t is None else block_t
    assert T % TT == 0, "block_t must divide T"

    xs_p = jnp.pad(xs, ((0, 0), (0, B_pad - B), (0, 0)))
    h0_p = jnp.pad(h0, ((0, B_pad - B), (0, H_pad - H)))

    # Split merged weights row-wise (x-part / h-part) and scatter the i2h / i2o
    # columns into lane-aligned [0:H] and [H_pad:H_pad+O] column blocks.
    wx = jnp.zeros((I, N_pad), jnp.float32)
    wx = wx.at[:, :H].set(wh_full[:I])
    wx = wx.at[:, H_pad:H_pad + O].set(wo_full[:I])
    wh = jnp.zeros((H_pad, N_pad), jnp.float32)
    wh = wh.at[:H, :H].set(wh_full[I:])
    wh = wh.at[:H, H_pad:H_pad + O].set(wo_full[I:])
    b = jnp.zeros((1, N_pad), jnp.float32)
    b = b.at[:, :H].set(bh)
    b = b.at[:, H_pad:H_pad + O].set(bo)

    flops = 2 * T * B_pad * (I + H_pad) * N_pad + 5 * T * B_pad * O_pad
    transcendentals = T * B_pad * (O_pad + 1)
    bytes_accessed = 4 * (xs_p.size + T * B_pad * O_pad + B_pad * H_pad
                          + wx.size + wh.size + b.size)

    kernel = functools.partial(rnn_seq_kernel, num_valid_out=O)

    out, h_fin = pl.pallas_call(
        kernel,
        out_shape=(
            jax.ShapeDtypeStruct((T, B_pad, O_pad), jnp.float32),
            jax.ShapeDtypeStruct((B_pad, H_pad), jnp.float32),
        ),
        grid=(T // TT,),
        in_specs=[
            pl.BlockSpec((TT, B_pad, I), lambda s: (s, 0, 0)),   # time-blocked x
            pl.BlockSpec((B_pad, H_pad), lambda s: (0, 0)),      # h0
            pl.BlockSpec((I, N_pad), lambda s: (0, 0)),          # W_x resident
            pl.BlockSpec((H_pad, N_pad), lambda s: (0, 0)),      # W_h resident
            pl.BlockSpec((1, N_pad), lambda s: (0, 0)),          # bias resident
        ],
        out_specs=(
            pl.BlockSpec((TT, B_pad, O_pad), lambda s: (s, 0, 0)),  # lane-dense out
            pl.BlockSpec((B_pad, H_pad), lambda s: (0, 0)),         # hidden carry
        ),
        compiler_params=pltpu.CompilerParams(
            dimension_semantics=("arbitrary",)),                 # time is sequential
        cost_estimate=pl.CostEstimate(
            flops=flops, transcendentals=transcendentals,
            bytes_accessed=bytes_accessed),
    )(xs_p, h0_p, wx, wh, b)

    return out[:, :B, :O], h_fin[:B, :H]


def rnn_forward(x, hidden, wh_full, bh, wo_full, bo):
    """Single cell step matching the PyTorch module's forward(input, hidden)."""
    out, h_new = rnn_sequence_forward(x[None], hidden, wh_full, bh, wo_full, bo)
    return out[0], h_new


def init_params(key, input_size, hidden_size, output_size):
    """Mimic nn.Linear default init (weights stored transposed vs. PyTorch)."""
    fan_in = input_size + hidden_size
    bound = 1.0 / math.sqrt(fan_in)
    k1, k2, k3, k4 = jax.random.split(key, 4)
    wh_full = jax.random.uniform(k1, (fan_in, hidden_size), jnp.float32, -bound, bound)
    bh = jax.random.uniform(k2, (1, hidden_size), jnp.float32, -bound, bound)
    wo_full = jax.random.uniform(k3, (fan_in, output_size), jnp.float32, -bound, bound)
    bo = jax.random.uniform(k4, (1, output_size), jnp.float32, -bound, bound)
    return wh_full, bh, wo_full, bo


if __name__ == "__main__":
    input_size, hidden_size, output_size = 16, 32, 8
    batch, seq_len = 2, 8

    key = jax.random.PRNGKey(0)
    kx, kp = jax.random.split(key)
    xs = jax.random.normal(kx, (seq_len, batch, input_size), jnp.float32)
    h0 = jnp.zeros((batch, hidden_size), jnp.float32)          # initHidden (broadcast to batch)

    wh_full, bh, wo_full, bo = init_params(kp, input_size, hidden_size, output_size)

    # fused whole-sequence kernel (single grid step: whole sequence time-blocked)
    seq_fn = jax.jit(rnn_sequence_forward)
    outs, h_fin = seq_fn(xs, h0, wh_full, bh, wo_full, bo)
    jax.block_until_ready((outs, h_fin))

    # pure-JAX reference: apply the PyTorch cell semantics step by step
    h = h0
    ref_outs = []
    for t in range(seq_len):
        comb = jnp.concatenate([xs[t], h], axis=1)
        o = jax.nn.log_softmax(comb @ wo_full + bo, axis=1)
        h = comb @ wh_full + bh
        ref_outs.append(o)
    ref_outs = jnp.stack(ref_outs)

    assert jnp.allclose(outs, ref_outs, atol=1e-4, rtol=1e-4), "sequence output mismatch"
    assert jnp.allclose(h_fin, h, atol=1e-4, rtol=1e-4), "final hidden mismatch"

    # single-step API matching the module's forward(input, hidden)
    out1, h1 = rnn_forward(xs[0], h0, wh_full, bh, wo_full, bo)
    jax.block_until_ready((out1, h1))
    comb0 = jnp.concatenate([xs[0], h0], axis=1)
    assert jnp.allclose(h1, comb0 @ wh_full + bh, atol=1e-4, rtol=1e-4)
    assert jnp.allclose(out1, jax.nn.log_softmax(comb0 @ wo_full + bo, axis=1),
                        atol=1e-4, rtol=1e-4)

    print("KERNEL_OK")
</pallas_src>

<mosaic_0001>
module attributes {stable_mosaic.version = 11 : i64} {
  func.func @rnn_seq_kernel(%arg0: i32, %arg1: memref<8x8x16xf32, #tpu.memory_space<vmem>>, %arg2: memref<8x128xf32, #tpu.memory_space<vmem>>, %arg3: memref<16x256xf32, #tpu.memory_space<vmem>>, %arg4: memref<128x256xf32, #tpu.memory_space<vmem>>, %arg5: memref<1x256xf32, #tpu.memory_space<vmem>>, %arg6: memref<8x8x128xf32, #tpu.memory_space<vmem>>, %arg7: memref<8x128xf32, #tpu.memory_space<vmem>>) attributes {dimension_semantics = [#tpu.dimension_semantics<arbitrary>], iteration_bounds = array<i64: 1>, scalar_prefetch = 0 : i64, scratch_operands = 0 : i64, tpu.core_type = #tpu.core_type<tc>, window_params = [{transform_indices = @transform_0, window_bounds = array<i64: 8, 8, 16>}, {pipeline_mode = #tpu.pipeline_mode<synchronous>, transform_indices = @transform_1, window_bounds = array<i64: 8, 128>}, {pipeline_mode = #tpu.pipeline_mode<synchronous>, transform_indices = @transform_2, window_bounds = array<i64: 16, 256>}, {pipeline_mode = #tpu.pipeline_mode<synchronous>, transform_indices = @transform_3, window_bounds = array<i64: 128, 256>}, {pipeline_mode = #tpu.pipeline_mode<synchronous>, transform_indices = @transform_4, window_bounds = array<i64: 1, 256>}, {transform_indices = @transform_5, window_bounds = array<i64: 8, 8, 128>}, {pipeline_mode = #tpu.pipeline_mode<synchronous>, transform_indices = @transform_6, window_bounds = array<i64: 8, 128>}]} {
    %c0_i32 = arith.constant 0 : i32
    %0 = arith.cmpi eq, %arg0, %c0_i32 : i32
    %1 = arith.extui %0 : i1 to i32
    %c0_i32_0 = arith.constant 0 : i32
    %2 = arith.cmpi ne, %1, %c0_i32_0 : i32
    scf.if %2 {
      %c0_76 = arith.constant 0 : index
      %c0_77 = arith.constant 0 : index
      %212 = vector.load %arg2[%c0_76, %c0_77] : memref<8x128xf32, #tpu.memory_space<vmem>>, vector<8x128xf32>
      %c0_78 = arith.constant 0 : index
      %c0_79 = arith.constant 0 : index
      %213 = vector.load %arg7[%c0_78, %c0_79] : memref<8x128xf32, #tpu.memory_space<vmem>>, vector<8x128xf32>
      tpu.vector_store %arg7[%c0_78, %c0_79], %212 {strides = array<i32>} : memref<8x128xf32, #tpu.memory_space<vmem>>, vector<8x128xf32>,
    } else {
    }
    %c0 = arith.constant 0 : index
    %c0_1 = arith.constant 0 : index
    %3 = vector.load %arg3[%c0, %c0_1] : memref<16x256xf32, #tpu.memory_space<vmem>>, vector<16x256xf32>
    %c0_2 = arith.constant 0 : index
    %c0_3 = arith.constant 0 : index
    %4 = vector.load %arg4[%c0_2, %c0_3] : memref<128x256xf32, #tpu.memory_space<vmem>>, vector<128x256xf32>
    %c0_4 = arith.constant 0 : index
    %c0_5 = arith.constant 0 : index
    %5 = vector.load %arg5[%c0_4, %c0_5] : memref<1x256xf32, #tpu.memory_space<vmem>>, vector<1x256xf32>
    %6 = tpu.iota {dimensions = array<i32: 1>} : vector<8x128xi32>
    %c8_i32 = arith.constant 8 : i32
    %7 = vector.broadcast %c8_i32 : i32 to vector<8x128xi32>
    %8 = arith.cmpi slt, %6, %7 : vector<8x128xi32>
    %cst = arith.constant -1.000000e+30 : f32
    %9 = vector.broadcast %cst : f32 to vector<8x128xf32>
    %c0_6 = arith.constant 0 : index
    %c0_7 = arith.constant 0 : index
    %10 = vector.load %arg7[%c0_6, %c0_7] : memref<8x128xf32, #tpu.memory_space<vmem>>, vector<8x128xf32>
    %c0_i32_8 = arith.constant 0 : i32
    %11 = arith.index_cast %c0_i32_8 : i32 to index
    %c0_9 = arith.constant 0 : index
    %c0_10 = arith.constant 0 : index
    %12 = vector.load %arg1[%11, %c0_9, %c0_10] : memref<8x8x16xf32, #tpu.memory_space<vmem>>, vector<1x8x16xf32>
    %13 = vector.shape_cast %12 : vector<1x8x16xf32> to vector<8x16xf32>
    %cst_11 = arith.constant dense<0.000000e+00> : vector<8x256xf32>
    %14 = tpu.matmul %13, %3, %cst_11 {dimension_numbers = #tpu.dot_dimension_numbers<[1], [0], [0], [1], [0, 0, 1, 1], [], []>} : vector<8x16xf32>, vector<16x256xf32>, vector<8x256xf32> -> vector<8x256xf32>
    %cst_12 = arith.constant dense<0.000000e+00> : vector<8x256xf32>
    %15 = tpu.matmul %10, %4, %cst_12 {dimension_numbers = #tpu.dot_dimension_numbers<[1], [0], [0], [1], [0, 0, 1, 1], [], []>} : vector<8x128xf32>, vector<128x256xf32>, vector<8x256xf32> -> vector<8x256xf32>
    %16 = arith.addf %14, %15 : vector<8x256xf32>
    %17 = vector.broadcast %5 : vector<1x256xf32> to vector<8x256xf32>
    %18 = arith.addf %16, %17 : vector<8x256xf32>
    %19 = vector.extract_strided_slice %18 {offsets = [0, 0], sizes = [8, 128], strides = [1, 1]} : vector<8x256xf32> to vector<8x128xf32>
    %20 = vector.extract_strided_slice %18 {offsets = [0, 128], sizes = [8, 128], strides = [1, 1]} : vector<8x256xf32> to vector<8x128xf32>
    %21 = arith.select %8, %20, %9 : vector<8x128xi1>, vector<8x128xf32>
    %cst_13 = arith.constant dense<0xFF800000> : vector<8xf32>
    %22 = vector.multi_reduction <maximumf>, %21, %cst_13 [1] : vector<8x128xf32> to vector<8xf32>
    %23 = vector.shape_cast %22 : vector<8xf32> to vector<8x1xf32>
    %24 = vector.broadcast %23 : vector<8x1xf32> to vector<8x128xf32>
    %25 = arith.subf %21, %24 : vector<8x128xf32>
    %26 = math.exp %25 : vector<8x128xf32>
    %cst_14 = arith.constant dense<0.000000e+00> : vector<8xf32>
    %27 = vector.multi_reduction <add>, %26, %cst_14 [1] : vector<8x128xf32> to vector<8xf32>
    %28 = vector.shape_cast %27 : vector<8xf32> to vector<8x1xf32>
    %29 = math.log %28 : vector<8x1xf32>
    %30 = vector.broadcast %29 : vector<8x1xf32> to vector<8x128xf32>
    %31 = arith.subf %25, %30 : vector<8x128xf32>
    %32 = arith.index_cast %c0_i32_8 : i32 to index
    %c0_15 = arith.constant 0 : index
    %c0_16 = arith.constant 0 : index
    %33 = vector.load %arg6[%32, %c0_15, %c0_16] : memref<8x8x128xf32, #tpu.memory_space<vmem>>, vector<1x8x128xf32>
    %34 = vector.shape_cast %33 : vector<1x8x128xf32> to vector<8x128xf32>
    %35 = vector.shape_cast %31 : vector<8x128xf32> to vector<1x8x128xf32>
    tpu.vector_store %arg6[%32, %c0_15, %c0_16], %35 {strides = array<i32>} : memref<8x8x128xf32, #tpu.memory_space<vmem>>, vector<1x8x128xf32>,
    %c1_i32 = arith.constant 1 : i32
    %36 = arith.index_cast %c1_i32 : i32 to index
    %c0_17 = arith.constant 0 : index
    %c0_18 = arith.constant 0 : index
    %37 = vector.load %arg1[%36, %c0_17, %c0_18] : memref<8x8x16xf32, #tpu.memory_space<vmem>>, vector<1x8x16xf32>
    %38 = vector.shape_cast %37 : vector<1x8x16xf32> to vector<8x16xf32>
    %cst_19 = arith.constant dense<0.000000e+00> : vector<8x256xf32>
    %39 = tpu.matmul %38, %3, %cst_19 {dimension_numbers = #tpu.dot_dimension_numbers<[1], [0], [0], [1], [0, 0, 1, 1], [], []>} : vector<8x16xf32>, vector<16x256xf32>, vector<8x256xf32> -> vector<8x256xf32>
    %cst_20 = arith.constant dense<0.000000e+00> : vector<8x256xf32>
    %40 = tpu.matmul %19, %4, %cst_20 {dimension_numbers = #tpu.dot_dimension_numbers<[1], [0], [0], [1], [0, 0, 1, 1], [], []>} : vector<8x128xf32>, vector<128x256xf32>, vector<8x256xf32> -> vector<8x256xf32>
    %41 = arith.addf %39, %40 : vector<8x256xf32>
    %42 = vector.broadcast %5 : vector<1x256xf32> to vector<8x256xf32>
    %43 = arith.addf %41, %42 : vector<8x256xf32>
    %44 = vector.extract_strided_slice %43 {offsets = [0, 0], sizes = [8, 128], strides = [1, 1]} : vector<8x256xf32> to vector<8x128xf32>
    %45 = vector.extract_strided_slice %43 {offsets = [0, 128], sizes = [8, 128], strides = [1, 1]} : vector<8x256xf32> to vector<8x128xf32>
    %46 = arith.select %8, %45, %9 : vector<8x128xi1>, vector<8x128xf32>
    %cst_21 = arith.constant dense<0xFF800000> : vector<8xf32>
    %47 = vector.multi_reduction <maximumf>, %46, %cst_21 [1] : vector<8x128xf32> to vector<8xf32>
    %48 = vector.shape_cast %47 : vector<8xf32> to vector<8x1xf32>
    %49 = vector.broadcast %48 : vector<8x1xf32> to vector<8x128xf32>
    %50 = arith.subf %46, %49 : vector<8x128xf32>
    %51 = math.exp %50 : vector<8x128xf32>
    %cst_22 = arith.constant dense<0.000000e+00> : vector<8xf32>
    %52 = vector.multi_reduction <add>, %51, %cst_22 [1] : vector<8x128xf32> to vector<8xf32>
    %53 = vector.shape_cast %52 : vector<8xf32> to vector<8x1xf32>
    %54 = math.log %53 : vector<8x1xf32>
    %55 = vector.broadcast %54 : vector<8x1xf32> to vector<8x128xf32>
    %56 = arith.subf %50, %55 : vector<8x128xf32>
    %57 = arith.index_cast %c1_i32 : i32 to index
    %c0_23 = arith.constant 0 : index
    %c0_24 = arith.constant 0 : index
    %58 = vector.load %arg6[%57, %c0_23, %c0_24] : memref<8x8x128xf32, #tpu.memory_space<vmem>>, vector<1x8x128xf32>
    %59 = vector.shape_cast %58 : vector<1x8x128xf32> to vector<8x128xf32>
    %60 = vector.shape_cast %56 : vector<8x128xf32> to vector<1x8x128xf32>
    tpu.vector_store %arg6[%57, %c0_23, %c0_24], %60 {strides = array<i32>} : memref<8x8x128xf32, #tpu.memory_space<vmem>>, vector<1x8x128xf32>,
    %c2_i32 = arith.constant 2 : i32
    %61 = arith.index_cast %c2_i32 : i32 to index
    %c0_25 = arith.constant 0 : index
    %c0_26 = arith.constant 0 : index
    %62 = vector.load %arg1[%61, %c0_25, %c0_26] : memref<8x8x16xf32, #tpu.memory_space<vmem>>, vector<1x8x16xf32>
    %63 = vector.shape_cast %62 : vector<1x8x16xf32> to vector<8x16xf32>
    %cst_27 = arith.constant dense<0.000000e+00> : vector<8x256xf32>
    %64 = tpu.matmul %63, %3, %cst_27 {dimension_numbers = #tpu.dot_dimension_numbers<[1], [0], [0], [1], [0, 0, 1, 1], [], []>} : vector<8x16xf32>, vector<16x256xf32>, vector<8x256xf32> -> vector<8x256xf32>
    %cst_28 = arith.constant dense<0.000000e+00> : vector<8x256xf32>
    %65 = tpu.matmul %44, %4, %cst_28 {dimension_numbers = #tpu.dot_dimension_numbers<[1], [0], [0], [1], [0, 0, 1, 1], [], []>} : vector<8x128xf32>, vector<128x256xf32>, vector<8x256xf32> -> vector<8x256xf32>
    %66 = arith.addf %64, %65 : vector<8x256xf32>
    %67 = vector.broadcast %5 : vector<1x256xf32> to vector<8x256xf32>
    %68 = arith.addf %66, %67 : vector<8x256xf32>
    %69 = vector.extract_strided_slice %68 {offsets = [0, 0], sizes = [8, 128], strides = [1, 1]} : vector<8x256xf32> to vector<8x128xf32>
    %70 = vector.extract_strided_slice %68 {offsets = [0, 128], sizes = [8, 128], strides = [1, 1]} : vector<8x256xf32> to vector<8x128xf32>
    %71 = arith.select %8, %70, %9 : vector<8x128xi1>, vector<8x128xf32>
    %cst_29 = arith.constant dense<0xFF800000> : vector<8xf32>
    %72 = vector.multi_reduction <maximumf>, %71, %cst_29 [1] : vector<8x128xf32> to vector<8xf32>
    %73 = vector.shape_cast %72 : vector<8xf32> to vector<8x1xf32>
    %74 = vector.broadcast %73 : vector<8x1xf32> to vector<8x128xf32>
    %75 = arith.subf %71, %74 : vector<8x128xf32>
    %76 = math.exp %75 : vector<8x128xf32>
    %cst_30 = arith.constant dense<0.000000e+00> : vector<8xf32>
    %77 = vector.multi_reduction <add>, %76, %cst_30 [1] : vector<8x128xf32> to vector<8xf32>
    %78 = vector.shape_cast %77 : vector<8xf32> to vector<8x1xf32>
    %79 = math.log %78 : vector<8x1xf32>
    %80 = vector.broadcast %79 : vector<8x1xf32> to vector<8x128xf32>
    %81 = arith.subf %75, %80 : vector<8x128xf32>
    %82 = arith.index_cast %c2_i32 : i32 to index
    %c0_31 = arith.constant 0 : index
    %c0_32 = arith.constant 0 : index
    %83 = vector.load %arg6[%82, %c0_31, %c0_32] : memref<8x8x128xf32, #tpu.memory_space<vmem>>, vector<1x8x128xf32>
    %84 = vector.shape_cast %83 : vector<1x8x128xf32> to vector<8x128xf32>
    %85 = vector.shape_cast %81 : vector<8x128xf32> to vector<1x8x128xf32>
    tpu.vector_store %arg6[%82, %c0_31, %c0_32], %85 {strides = array<i32>} : memref<8x8x128xf32, #tpu.memory_space<vmem>>, vector<1x8x128xf32>,
    %c3_i32 = arith.constant 3 : i32
    %86 = arith.index_cast %c3_i32 : i32 to index
    %c0_33 = arith.constant 0 : index
    %c0_34 = arith.constant 0 : index
    %87 = vector.load %arg1[%86, %c0_33, %c0_34] : memref<8x8x16xf32, #tpu.memory_space<vmem>>, vector<1x8x16xf32>
    %88 = vector.shape_cast %87 : vector<1x8x16xf32> to vector<8x16xf32>
    %cst_35 = arith.constant dense<0.000000e+00> : vector<8x256xf32>
    %89 = tpu.matmul %88, %3, %cst_35 {dimension_numbers = #tpu.dot_dimension_numbers<[1], [0], [0], [1], [0, 0, 1, 1], [], []>} : vector<8x16xf32>, vector<16x256xf32>, vector<8x256xf32> -> vector<8x256xf32>
    %cst_36 = arith.constant dense<0.000000e+00> : vector<8x256xf32>
    %90 = tpu.matmul %69, %4, %cst_36 {dimension_numbers = #tpu.dot_dimension_numbers<[1], [0], [0], [1], [0, 0, 1, 1], [], []>} : vector<8x128xf32>, vector<128x256xf32>, vector<8x256xf32> -> vector<8x256xf32>
    %91 = arith.addf %89, %90 : vector<8x256xf32>
    %92 = vector.broadcast %5 : vector<1x256xf32> to vector<8x256xf32>
    %93 = arith.addf %91, %92 : vector<8x256xf32>
    %94 = vector.extract_strided_slice %93 {offsets = [0, 0], sizes = [8, 128], strides = [1, 1]} : vector<8x256xf32> to vector<8x128xf32>
    %95 = vector.extract_strided_slice %93 {offsets = [0, 128], sizes = [8, 128], strides = [1, 1]} : vector<8x256xf32> to vector<8x128xf32>
    %96 = arith.select %8, %95, %9 : vector<8x128xi1>, vector<8x128xf32>
    %cst_37 = arith.constant dense<0xFF800000> : vector<8xf32>
    %97 = vector.multi_reduction <maximumf>, %96, %cst_37 [1] : vector<8x128xf32> to vector<8xf32>
    %98 = vector.shape_cast %97 : vector<8xf32> to vector<8x1xf32>
    %99 = vector.broadcast %98 : vector<8x1xf32> to vector<8x128xf32>
    %100 = arith.subf %96, %99 : vector<8x128xf32>
    %101 = math.exp %100 : vector<8x128xf32>
    %cst_38 = arith.constant dense<0.000000e+00> : vector<8xf32>
    %102 = vector.multi_reduction <add>, %101, %cst_38 [1] : vector<8x128xf32> to vector<8xf32>
    %103 = vector.shape_cast %102 : vector<8xf32> to vector<8x1xf32>
    %104 = math.log %103 : vector<8x1xf32>
    %105 = vector.broadcast %104 : vector<8x1xf32> to vector<8x128xf32>
    %106 = arith.subf %100, %105 : vector<8x128xf32>
    %107 = arith.index_cast %c3_i32 : i32 to index
    %c0_39 = arith.constant 0 : index
    %c0_40 = arith.constant 0 : index
    %108 = vector.load %arg6[%107, %c0_39, %c0_40] : memref<8x8x128xf32, #tpu.memory_space<vmem>>, vector<1x8x128xf32>
    %109 = vector.shape_cast %108 : vector<1x8x128xf32> to vector<8x128xf32>
    %110 = vector.shape_cast %106 : vector<8x128xf32> to vector<1x8x128xf32>
    tpu.vector_store %arg6[%107, %c0_39, %c0_40], %110 {strides = array<i32>} : memref<8x8x128xf32, #tpu.memory_space<vmem>>, vector<1x8x128xf32>,
    %c4_i32 = arith.constant 4 : i32
    %111 = arith.index_cast %c4_i32 : i32 to index
    %c0_41 = arith.constant 0 : index
    %c0_42 = arith.constant 0 : index
    %112 = vector.load %arg1[%111, %c0_41, %c0_42] : memref<8x8x16xf32, #tpu.memory_space<vmem>>, vector<1x8x16xf32>
    %113 = vector.shape_cast %112 : vector<1x8x16xf32> to vector<8x16xf32>
    %cst_43 = arith.constant dense<0.000000e+00> : vector<8x256xf32>
    %114 = tpu.matmul %113, %3, %cst_43 {dimension_numbers = #tpu.dot_dimension_numbers<[1], [0], [0], [1], [0, 0, 1, 1], [], []>} : vector<8x16xf32>, vector<16x256xf32>, vector<8x256xf32> -> vector<8x256xf32>
    %cst_44 = arith.constant dense<0.000000e+00> : vector<8x256xf32>
    %115 = tpu.matmul %94, %4, %cst_44 {dimension_numbers = #tpu.dot_dimension_numbers<[1], [0], [0], [1], [0, 0, 1, 1], [], []>} : vector<8x128xf32>, vector<128x256xf32>, vector<8x256xf32> -> vector<8x256xf32>
    %116 = arith.addf %114, %115 : vector<8x256xf32>
    %117 = vector.broadcast %5 : vector<1x256xf32> to vector<8x256xf32>
    %118 = arith.addf %116, %117 : vector<8x256xf32>
    %119 = vector.extract_strided_slice %118 {offsets = [0, 0], sizes = [8, 128], strides = [1, 1]} : vector<8x256xf32> to vector<8x128xf32>
    %120 = vector.extract_strided_slice %118 {offsets = [0, 128], sizes = [8, 128], strides = [1, 1]} : vector<8x256xf32> to vector<8x128xf32>
    %121 = arith.select %8, %120, %9 : vector<8x128xi1>, vector<8x128xf32>
    %cst_45 = arith.constant dense<0xFF800000> : vector<8xf32>
    %122 = vector.multi_reduction <maximumf>, %121, %cst_45 [1] : vector<8x128xf32> to vector<8xf32>
    %123 = vector.shape_cast %122 : vector<8xf32> to vector<8x1xf32>
    %124 = vector.broadcast %123 : vector<8x1xf32> to vector<8x128xf32>
    %125 = arith.subf %121, %124 : vector<8x128xf32>
    %126 = math.exp %125 : vector<8x128xf32>
    %cst_46 = arith.constant dense<0.000000e+00> : vector<8xf32>
    %127 = vector.multi_reduction <add>, %126, %cst_46 [1] : vector<8x128xf32> to vector<8xf32>
    %128 = vector.shape_cast %127 : vector<8xf32> to vector<8x1xf32>
    %129 = math.log %128 : vector<8x1xf32>
    %130 = vector.broadcast %129 : vector<8x1xf32> to vector<8x128xf32>
    %131 = arith.subf %125, %130 : vector<8x128xf32>
    %132 = arith.index_cast %c4_i32 : i32 to index
    %c0_47 = arith.constant 0 : index
    %c0_48 = arith.constant 0 : index
    %133 = vector.load %arg6[%132, %c0_47, %c0_48] : memref<8x8x128xf32, #tpu.memory_space<vmem>>, vector<1x8x128xf32>
    %134 = vector.shape_cast %133 : vector<1x8x128xf32> to vector<8x128xf32>
    %135 = vector.shape_cast %131 : vector<8x128xf32> to vector<1x8x128xf32>
    tpu.vector_store %arg6[%132, %c0_47, %c0_48], %135 {strides = array<i32>} : memref<8x8x128xf32, #tpu.memory_space<vmem>>, vector<1x8x128xf32>,
    %c5_i32 = arith.constant 5 : i32
    %136 = arith.index_cast %c5_i32 : i32 to index
    %c0_49 = arith.constant 0 : index
    %c0_50 = arith.constant 0 : index
    %137 = vector.load %arg1[%136, %c0_49, %c0_50] : memref<8x8x16xf32, #tpu.memory_space<vmem>>, vector<1x8x16xf32>
    %138 = vector.shape_cast %137 : vector<1x8x16xf32> to vector<8x16xf32>
    %cst_51 = arith.constant dense<0.000000e+00> : vector<8x256xf32>
    %139 = tpu.matmul %138, %3, %cst_51 {dimension_numbers = #tpu.dot_dimension_numbers<[1], [0], [0], [1], [0, 0, 1, 1], [], []>} : vector<8x16xf32>, vector<16x256xf32>, vector<8x256xf32> -> vector<8x256xf32>
    %cst_52 = arith.constant dense<0.000000e+00> : vector<8x256xf32>
    %140 = tpu.matmul %119, %4, %cst_52 {dimension_numbers = #tpu.dot_dimension_numbers<[1], [0], [0], [1], [0, 0, 1, 1], [], []>} : vector<8x128xf32>, vector<128x256xf32>, vector<8x256xf32> -> vector<8x256xf32>
    %141 = arith.addf %139, %140 : vector<8x256xf32>
    %142 = vector.broadcast %5 : vector<1x256xf32> to vector<8x256xf32>
    %143 = arith.addf %141, %142 : vector<8x256xf32>
    %144 = vector.extract_strided_slice %143 {offsets = [0, 0], sizes = [8, 128], strides = [1, 1]} : vector<8x256xf32> to vector<8x128xf32>
    %145 = vector.extract_strided_slice %143 {offsets = [0, 128], sizes = [8, 128], strides = [1, 1]} : vector<8x256xf32> to vector<8x128xf32>
    %146 = arith.select %8, %145, %9 : vector<8x128xi1>, vector<8x128xf32>
    %cst_53 = arith.constant dense<0xFF800000> : vector<8xf32>
    %147 = vector.multi_reduction <maximumf>, %146, %cst_53 [1] : vector<8x128xf32> to vector<8xf32>
    %148 = vector.shape_cast %147 : vector<8xf32> to vector<8x1xf32>
    %149 = vector.broadcast %148 : vector<8x1xf32> to vector<8x128xf32>
    %150 = arith.subf %146, %149 : vector<8x128xf32>
    %151 = math.exp %150 : vector<8x128xf32>
    %cst_54 = arith.constant dense<0.000000e+00> : vector<8xf32>
    %152 = vector.multi_reduction <add>, %151, %cst_54 [1] : vector<8x128xf32> to vector<8xf32>
    %153 = vector.shape_cast %152 : vector<8xf32> to vector<8x1xf32>
    %154 = math.log %153 : vector<8x1xf32>
    %155 = vector.broadcast %154 : vector<8x1xf32> to vector<8x128xf32>
    %156 = arith.subf %150, %155 : vector<8x128xf32>
    %157 = arith.index_cast %c5_i32 : i32 to index
    %c0_55 = arith.constant 0 : index
    %c0_56 = arith.constant 0 : index
    %158 = vector.load %arg6[%157, %c0_55, %c0_56] : memref<8x8x128xf32, #tpu.memory_space<vmem>>, vector<1x8x128xf32>
    %159 = vector.shape_cast %158 : vector<1x8x128xf32> to vector<8x128xf32>
    %160 = vector.shape_cast %156 : vector<8x128xf32> to vector<1x8x128xf32>
    tpu.vector_store %arg6[%157, %c0_55, %c0_56], %160 {strides = array<i32>} : memref<8x8x128xf32, #tpu.memory_space<vmem>>, vector<1x8x128xf32>,
    %c6_i32 = arith.constant 6 : i32
    %161 = arith.index_cast %c6_i32 : i32 to index
    %c0_57 = arith.constant 0 : index
    %c0_58 = arith.constant 0 : index
    %162 = vector.load %arg1[%161, %c0_57, %c0_58] : memref<8x8x16xf32, #tpu.memory_space<vmem>>, vector<1x8x16xf32>
    %163 = vector.shape_cast %162 : vector<1x8x16xf32> to vector<8x16xf32>
    %cst_59 = arith.constant dense<0.000000e+00> : vector<8x256xf32>
    %164 = tpu.matmul %163, %3, %cst_59 {dimension_numbers = #tpu.dot_dimension_numbers<[1], [0], [0], [1], [0, 0, 1, 1], [], []>} : vector<8x16xf32>, vector<16x256xf32>, vector<8x256xf32> -> vector<8x256xf32>
    %cst_60 = arith.constant dense<0.000000e+00> : vector<8x256xf32>
    %165 = tpu.matmul %144, %4, %cst_60 {dimension_numbers = #tpu.dot_dimension_numbers<[1], [0], [0], [1], [0, 0, 1, 1], [], []>} : vector<8x128xf32>, vector<128x256xf32>, vector<8x256xf32> -> vector<8x256xf32>
    %166 = arith.addf %164, %165 : vector<8x256xf32>
    %167 = vector.broadcast %5 : vector<1x256xf32> to vector<8x256xf32>
    %168 = arith.addf %166, %167 : vector<8x256xf32>
    %169 = vector.extract_strided_slice %168 {offsets = [0, 0], sizes = [8, 128], strides = [1, 1]} : vector<8x256xf32> to vector<8x128xf32>
    %170 = vector.extract_strided_slice %168 {offsets = [0, 128], sizes = [8, 128], strides = [1, 1]} : vector<8x256xf32> to vector<8x128xf32>
    %171 = arith.select %8, %170, %9 : vector<8x128xi1>, vector<8x128xf32>
    %cst_61 = arith.constant dense<0xFF800000> : vector<8xf32>
    %172 = vector.multi_reduction <maximumf>, %171, %cst_61 [1] : vector<8x128xf32> to vector<8xf32>
    %173 = vector.shape_cast %172 : vector<8xf32> to vector<8x1xf32>
    %174 = vector.broadcast %173 : vector<8x1xf32> to vector<8x128xf32>
    %175 = arith.subf %171, %174 : vector<8x128xf32>
    %176 = math.exp %175 : vector<8x128xf32>
    %cst_62 = arith.constant dense<0.000000e+00> : vector<8xf32>
    %177 = vector.multi_reduction <add>, %176, %cst_62 [1] : vector<8x128xf32> to vector<8xf32>
    %178 = vector.shape_cast %177 : vector<8xf32> to vector<8x1xf32>
    %179 = math.log %178 : vector<8x1xf32>
    %180 = vector.broadcast %179 : vector<8x1xf32> to vector<8x128xf32>
    %181 = arith.subf %175, %180 : vector<8x128xf32>
    %182 = arith.index_cast %c6_i32 : i32 to index
    %c0_63 = arith.constant 0 : index
    %c0_64 = arith.constant 0 : index
    %183 = vector.load %arg6[%182, %c0_63, %c0_64] : memref<8x8x128xf32, #tpu.memory_space<vmem>>, vector<1x8x128xf32>
    %184 = vector.shape_cast %183 : vector<1x8x128xf32> to vector<8x128xf32>
    %185 = vector.shape_cast %181 : vector<8x128xf32> to vector<1x8x128xf32>
    tpu.vector_store %arg6[%182, %c0_63, %c0_64], %185 {strides = array<i32>} : memref<8x8x128xf32, #tpu.memory_space<vmem>>, vector<1x8x128xf32>,
    %c7_i32 = arith.constant 7 : i32
    %186 = arith.index_cast %c7_i32 : i32 to index
    %c0_65 = arith.constant 0 : index
    %c0_66 = arith.constant 0 : index
    %187 = vector.load %arg1[%186, %c0_65, %c0_66] : memref<8x8x16xf32, #tpu.memory_space<vmem>>, vector<1x8x16xf32>
    %188 = vector.shape_cast %187 : vector<1x8x16xf32> to vector<8x16xf32>
    %cst_67 = arith.constant dense<0.000000e+00> : vector<8x256xf32>
    %189 = tpu.matmul %188, %3, %cst_67 {dimension_numbers = #tpu.dot_dimension_numbers<[1], [0], [0], [1], [0, 0, 1, 1], [], []>} : vector<8x16xf32>, vector<16x256xf32>, vector<8x256xf32> -> vector<8x256xf32>
    %cst_68 = arith.constant dense<0.000000e+00> : vector<8x256xf32>
    %190 = tpu.matmul %169, %4, %cst_68 {dimension_numbers = #tpu.dot_dimension_numbers<[1], [0], [0], [1], [0, 0, 1, 1], [], []>} : vector<8x128xf32>, vector<128x256xf32>, vector<8x256xf32> -> vector<8x256xf32>
    %191 = arith.addf %189, %190 : vector<8x256xf32>
    %192 = vector.broadcast %5 : vector<1x256xf32> to vector<8x256xf32>
    %193 = arith.addf %191, %192 : vector<8x256xf32>
    %194 = vector.extract_strided_slice %193 {offsets = [0, 0], sizes = [8, 128], strides = [1, 1]} : vector<8x256xf32> to vector<8x128xf32>
    %195 = vector.extract_strided_slice %193 {offsets = [0, 128], sizes = [8, 128], strides = [1, 1]} : vector<8x256xf32> to vector<8x128xf32>
    %196 = arith.select %8, %195, %9 : vector<8x128xi1>, vector<8x128xf32>
    %cst_69 = arith.constant dense<0xFF800000> : vector<8xf32>
    %197 = vector.multi_reduction <maximumf>, %196, %cst_69 [1] : vector<8x128xf32> to vector<8xf32>
    %198 = vector.shape_cast %197 : vector<8xf32> to vector<8x1xf32>
    %199 = vector.broadcast %198 : vector<8x1xf32> to vector<8x128xf32>
    %200 = arith.subf %196, %199 : vector<8x128xf32>
    %201 = math.exp %200 : vector<8x128xf32>
    %cst_70 = arith.constant dense<0.000000e+00> : vector<8xf32>
    %202 = vector.multi_reduction <add>, %201, %cst_70 [1] : vector<8x128xf32> to vector<8xf32>
    %203 = vector.shape_cast %202 : vector<8xf32> to vector<8x1xf32>
    %204 = math.log %203 : vector<8x1xf32>
    %205 = vector.broadcast %204 : vector<8x1xf32> to vector<8x128xf32>
    %206 = arith.subf %200, %205 : vector<8x128xf32>
    %207 = arith.index_cast %c7_i32 : i32 to index
    %c0_71 = arith.constant 0 : index
    %c0_72 = arith.constant 0 : index
    %208 = vector.load %arg6[%207, %c0_71, %c0_72] : memref<8x8x128xf32, #tpu.memory_space<vmem>>, vector<1x8x128xf32>
    %209 = vector.shape_cast %208 : vector<1x8x128xf32> to vector<8x128xf32>
    %210 = vector.shape_cast %206 : vector<8x128xf32> to vector<1x8x128xf32>
    tpu.vector_store %arg6[%207, %c0_71, %c0_72], %210 {strides = array<i32>} : memref<8x8x128xf32, #tpu.memory_space<vmem>>, vector<1x8x128xf32>,
    %c8_i32_73 = arith.constant 8 : i32
    %c0_74 = arith.constant 0 : index
    %c0_75 = arith.constant 0 : index
    %211 = vector.load %arg7[%c0_74, %c0_75] : memref<8x128xf32, #tpu.memory_space<vmem>>, vector<8x128xf32>
    tpu.vector_store %arg7[%c0_74, %c0_75], %194 {strides = array<i32>} : memref<8x128xf32, #tpu.memory_space<vmem>>, vector<8x128xf32>,
    return
  }
  func.func @transform_0(%arg0: i32) -> (i32, i32, i32) {
    %c0_i32 = arith.constant 0 : i32
    %c0_i32_0 = arith.constant 0 : i32
    %c0_i32_1 = arith.constant 0 : i32
    return %arg0, %c0_i32, %c0_i32_0 : i32, i32, i32
  }
  func.func @transform_1(%arg0: i32) -> (i32, i32) {
    %c0_i32 = arith.constant 0 : i32
    %c0_i32_0 = arith.constant 0 : i32
    %c0_i32_1 = arith.constant 0 : i32
    return %c0_i32, %c0_i32_0 : i32, i32
  }
  func.func @transform_2(%arg0: i32) -> (i32, i32) {
    %c0_i32 = arith.constant 0 : i32
    %c0_i32_0 = arith.constant 0 : i32
    %c0_i32_1 = arith.constant 0 : i32
    return %c0_i32, %c0_i32_0 : i32, i32
  }
  func.func @transform_3(%arg0: i32) -> (i32, i32) {
    %c0_i32 = arith.constant 0 : i32
    %c0_i32_0 = arith.constant 0 : i32
    %c0_i32_1 = arith.constant 0 : i32
    return %c0_i32, %c0_i32_0 : i32, i32
  }
  func.func @transform_4(%arg0: i32) -> (i32, i32) {
    %c0_i32 = arith.constant 0 : i32
    %c0_i32_0 = arith.constant 0 : i32
    %c0_i32_1 = arith.constant 0 : i32
    return %c0_i32, %c0_i32_0 : i32, i32
  }
  func.func @transform_5(%arg0: i32) -> (i32, i32, i32) {
    %c0_i32 = arith.constant 0 : i32
    %c0_i32_0 = arith.constant 0 : i32
    %c0_i32_1 = arith.constant 0 : i32
    return %arg0, %c0_i32, %c0_i32_0 : i32, i32, i32
  }
  func.func @transform_6(%arg0: i32) -> (i32, i32) {
    %c0_i32 = arith.constant 0 : i32
    %c0_i32_0 = arith.constant 0 : i32
    %c0_i32_1 = arith.constant 0 : i32
    return %c0_i32, %c0_i32_0 : i32, i32
  }
}

</mosaic_0001>

<llo_original>
// kernel: rnn_sequence_forward.1
$region0: #{rnn_sequence_forward.1}
  #allocation0 [shape = 'u32[]', space=smem, size = 0x4, offset = 0x4, fixed_abs, tag = 'smem constant byte address 0x4 - core index']
  #allocation1 [shape = 'u32[72,128]{1,0:T(1,128)}', space=vmem, size = 0x9000, scoped, tag = 'internal scratch']
  %s0 = inlined_call_operand.vmem [shape: f32[8,8,16], index: 0, kind: input, shape index: {}]
  %s1 = inlined_call_operand.vmem [shape: f32[8,128], index: 1, kind: input, shape index: {}]
  %s2 = inlined_call_operand.vmem [shape: f32[16,256], index: 2, kind: input, shape index: {}]
  %s3 = inlined_call_operand.vmem [shape: f32[128,256], index: 3, kind: input, shape index: {}]
  %s4 = inlined_call_operand.vmem [shape: f32[1,256], index: 4, kind: input, shape index: {}]
  %s5 = inlined_call_operand.vmem [shape: f32[8,8,128], index: 5, kind: output, shape index: {0}]
  %s6 = inlined_call_operand.vmem [shape: f32[8,128], index: 6, kind: output, shape index: {1}]
  %7 = xla_tuple %s5, %s6
  %s8 = sld [smem:[#allocation0]]
  $region42: #{rnn_sequence_forward.1} parent=0
    _
  %s10 = ssub.s32 1, %s8
  %s11 = scalar_select 0, %s10, %s8
  // Predicated region
  $region2: #{rnn_sequence_forward.1} parent=0 // pred_check
    _
  $region3: #{rnn_sequence_forward.1} parent=0 // pred_check_branch
    %13 = sbr.rel (0) target = $region5
  $region4: #{rnn_sequence_forward.1} parent=0 // pred_region
    _
  $region5: #{rnn_sequence_forward.1} parent=0 // pred_fallthru
    _
  // Predicated region
  $region6: #{rnn_sequence_forward.1} parent=0 // pred_check
    _
  $region7: #{rnn_sequence_forward.1} parent=0 // pred_check_branch
    %15 = sbr.rel (0) target = $region9
  $region8: #{rnn_sequence_forward.1} parent=0 // pred_region
    _
  $region9: #{rnn_sequence_forward.1} parent=0 // pred_fallthru
    _
  // Predicated region
  $region10: #{rnn_sequence_forward.1} parent=0 // pred_check
    _
  $region11: #{rnn_sequence_forward.1} parent=0 // pred_check_branch
    %17 = sbr.rel (0) target = $region13
  $region12: #{rnn_sequence_forward.1} parent=0 // pred_region
    _
  $region13: #{rnn_sequence_forward.1} parent=0 // pred_fallthru
    _
  // Predicated region
  $region14: #{rnn_sequence_forward.1} parent=0 // pred_check
    _
  $region15: #{rnn_sequence_forward.1} parent=0 // pred_check_branch
    %19 = sbr.rel (0) target = $region17
  $region16: #{rnn_sequence_forward.1} parent=0 // pred_region
    _
  $region17: #{rnn_sequence_forward.1} parent=0 // pred_fallthru
    _
  // Predicated region
  $region18: #{rnn_sequence_forward.1} parent=0 // pred_check
    _
  $region19: #{rnn_sequence_forward.1} parent=0 // pred_check_branch
    %21 = sbr.rel (0) target = $region21
  $region20: #{rnn_sequence_forward.1} parent=0 // pred_region
    _
  $region21: #{rnn_sequence_forward.1} parent=0 // pred_fallthru
    _
  %p22 = scmp.eq.s32.totalorder 0, 0
  // Predicated region
  $region22: #{rnn_sequence_forward.1} parent=0 // pred_check
    %p23 = pneg %p22
  $region23: #{rnn_sequence_forward.1} parent=0 // pred_check_branch
    %25 = sbr.rel (%p23) target = $region25
  $region24: #{rnn_sequence_forward.1} parent=0 // pred_region
    %v26 = vld [vmem:[%s1] sm:$0xff]
    %27 = vst [vmem:[%s6] sm:$0xff] %v26
  $region25: #{rnn_sequence_forward.1} parent=0 // pred_fallthru
    _
  %v28 = vld [vmem:[%s2] sm:$0xff]
  %v29 = vld [vmem:[%s2 + $0x8] sm:$0xff]
  %v30 = vld [vmem:[%s2 + $0x10] sm:$0xff]
  %v31 = vld [vmem:[%s2 + $0x18] sm:$0xff]
  %v32 = vld [vmem:[%s3] sm:$0xff]
  %v33 = vld [vmem:[%s3 + $0x8] sm:$0xff]
  %v34 = vld [vmem:[%s3 + $0x10] sm:$0xff]
  %v35 = vld [vmem:[%s3 + $0x18] sm:$0xff]
  %v36 = vld [vmem:[%s3 + $0x20] sm:$0xff]
  %v37 = vld [vmem:[%s3 + $0x28] sm:$0xff]
  %v38 = vld [vmem:[%s3 + $0x30] sm:$0xff]
  %v39 = vld [vmem:[%s3 + $0x38] sm:$0xff]
  %v40 = vld [vmem:[%s3 + $0x40] sm:$0xff]
  %v41 = vld [vmem:[%s3 + $0x48] sm:$0xff]
  %v42 = vld [vmem:[%s3 + $0x50] sm:$0xff]
  %v43 = vld [vmem:[%s3 + $0x58] sm:$0xff]
  %v44 = vld [vmem:[%s3 + $0x60] sm:$0xff]
  %v45 = vld [vmem:[%s3 + $0x68] sm:$0xff]
  %v46 = vld [vmem:[%s3 + $0x70] sm:$0xff]
  %v47 = vld [vmem:[%s3 + $0x78] sm:$0xff]
  %v48 = vld [vmem:[%s3 + $0x80] sm:$0xff]
  %v49 = vld [vmem:[%s3 + $0x88] sm:$0xff]
  %v50 = vld [vmem:[%s3 + $0x90] sm:$0xff]
  %v51 = vld [vmem:[%s3 + $0x98] sm:$0xff]
  %v52 = vld [vmem:[%s3 + $0xa0] sm:$0xff]
  %v53 = vld [vmem:[%s3 + $0xa8] sm:$0xff]
  %v54 = vld [vmem:[%s3 + $0xb0] sm:$0xff]
  %v55 = vld [vmem:[%s3 + $0xb8] sm:$0xff]
  %v56 = vld [vmem:[%s3 + $0xc0] sm:$0xff]
  %v57 = vld [vmem:[%s3 + $0xc8] sm:$0xff]
  %v58 = vld [vmem:[%s3 + $0xd0] sm:$0xff]
  %v59 = vld [vmem:[%s3 + $0xd8] sm:$0xff]
  %v60 = vld [vmem:[%s3 + $0xe0] sm:$0xff]
  %v61 = vld [vmem:[%s3 + $0xe8] sm:$0xff]
  %v62 = vld [vmem:[%s3 + $0xf0] sm:$0xff]
  %v63 = vld [vmem:[%s3 + $0xf8] sm:$0xff]
  %v64 = vld [vmem:[%s4] sm:$0x3]
  %v65 = vlaneseq
  %v66 = vand.u32 %v65, 127
  %vm67 = vcmp.lt.s32.totalorder %v66, 8
  %v68 = vld [vmem:[%s6] sm:$0xff]
  %v69 = vld [vmem:[%s0] sm:$0xff]
  %70 = vmatpush.msra.mxu0 %v62
  %71 = vmatpush.msra.mxu0 %v60
  %72 = vmatpush.msra.mxu0 %v58
  %73 = vmatpush.msra.mxu0 %v56
  %74 = vmatpush.msra.mxu0 %v54
  %75 = vmatpush.msra.mxu0 %v52
  %76 = vmatpush.msra.mxu0 %v50
  %77 = vmatpush.msra.mxu0 %v48
  %78 = vmatpush.msra.mxu0 %v46
  %79 = vmatpush.msra.mxu0 %v44
  %80 = vmatpush.msra.mxu0 %v42
  %81 = vmatpush.msra.mxu0 %v40
  %82 = vmatpush.msra.mxu0 %v38
  %83 = vmatpush.msra.mxu0 %v36
  %84 = vmatpush.msra.mxu0 %v34
  %85 = vmatpush.msra.mxu0 %v32
  %86 = vmatmul.f32.gmra.mxu0 %v68
  %v87 = vpop.f32.mrf.mxu0
  %v88 = vadd.f32 0.0, %v87
  %89 = vdwg.mxu0
  %90 = vmatpush.msra.mxu0 %v63
  %91 = vmatpush.msra.mxu0 %v61
  %92 = vmatpush.msra.mxu0 %v59
  %93 = vmatpush.msra.mxu0 %v57
  %94 = vmatpush.msra.mxu0 %v55
  %95 = vmatpush.msra.mxu0 %v53
  %96 = vmatpush.msra.mxu0 %v51
  %97 = vmatpush.msra.mxu0 %v49
  %98 = vmatpush.msra.mxu0 %v47
  %99 = vmatpush.msra.mxu0 %v45
  %100 = vmatpush.msra.mxu0 %v43
  %101 = vmatpush.msra.mxu0 %v41
  %102 = vmatpush.msra.mxu0 %v39
  %103 = vmatpush.msra.mxu0 %v37
  %104 = vmatpush.msra.mxu0 %v35
  %105 = vmatpush.msra.mxu0 %v33
  %106 = vmatmul.f32.gmra.mxu0 %v68
  %v107 = vpop.f32.mrf.mxu0
  %v108 = vadd.f32 0.0, %v107
  %109 = vdwg.mxu0
  %vm110 = vcmask 130048
  %v112 = vsel %vm110, %v69, 0
  %114 = vmatpush.msra.mxu0 0.0
  %115 = vmatpush.msra.mxu0 0.0
  %116 = vmatpush.msra.mxu0 0.0
  %117 = vmatpush.msra.mxu0 0.0
  %118 = vmatpush.msra.mxu0 0.0
  %119 = vmatpush.msra.mxu0 0.0
  %120 = vmatpush.msra.mxu0 0.0
  %121 = vmatpush.msra.mxu0 0.0
  %122 = vmatpush.msra.mxu0 0.0
  %123 = vmatpush.msra.mxu0 0.0
  %124 = vmatpush.msra.mxu0 0.0
  %125 = vmatpush.msra.mxu0 0.0
  %126 = vmatpush.msra.mxu0 0.0
  %127 = vmatpush.msra.mxu0 0.0
  %128 = vmatpush.msra.mxu0 %v30
  %129 = vmatpush.msra.mxu0 %v28
  %130 = vmatmul.f32.gmra.mxu0 %v112
  %v131 = vpop.f32.mrf.mxu0
  %v132 = vadd.f32 %v88, %v131
  %133 = vdwg.mxu0
  %134 = vmatpush.msra.mxu0 0.0
  %135 = vmatpush.msra.mxu0 0.0
  %136 = vmatpush.msra.mxu0 0.0
  %137 = vmatpush.msra.mxu0 0.0
  %138 = vmatpush.msra.mxu0 0.0
  %139 = vmatpush.msra.mxu0 0.0
  %140 = vmatpush.msra.mxu0 0.0
  %141 = vmatpush.msra.mxu0 0.0
  %142 = vmatpush.msra.mxu0 0.0
  %143 = vmatpush.msra.mxu0 0.0
  %144 = vmatpush.msra.mxu0 0.0
  %145 = vmatpush.msra.mxu0 0.0
  %146 = vmatpush.msra.mxu0 0.0
  %147 = vmatpush.msra.mxu0 0.0
  %148 = vmatpush.msra.mxu0 %v31
  %149 = vmatpush.msra.mxu0 %v29
  %150 = vmatmul.f32.gmra.mxu0 %v112
  %v151 = vpop.f32.mrf.mxu0
  %v152 = vadd.f32 %v108, %v151
  %153 = vdwg.mxu0
  %v155 = vperm.slane %v64, 0
  %v156 = vperm.slane %v64, 1
  %v159 = vadd.f32 %v132, %v155
  %v160 = vadd.f32 %v152, %v156
  %v161 = vsel %vm67, %v160, -1e+30
  %162 = vmax.xlane.f32.xlu0 %v161
  %v163 = vpop.xlane.xlu0 %162
  %v164 = vsub.f32 %v161, %v163
  %v165 = vmul.f32 %v164, 1.442695
  %v166 = vpow.pop %v165
  %167 = vadd.xlane.f32.xlu0 %v166
  %v168 = vpop.xlane.xlu0 %167
  %v169 = vlog2.pop %v168
  %v170 = vmul.f32 %v169, 0.6931472
  %v171 = vsub.f32 %v164, %v170
  %172 = vst [vmem:[%s5] sm:$0xff] %v171
  %s173 = scalar_lea.vmem %s0, 8
  %v174 = vld [vmem:[%s173] sm:$0xff]
  %175 = vmatpush.msra.mxu0 %v62
  %176 = vmatpush.msra.mxu0 %v60
  %177 = vmatpush.msra.mxu0 %v58
  %178 = vmatpush.msra.mxu0 %v56
  %179 = vmatpush.msra.mxu0 %v54
  %180 = vmatpush.msra.mxu0 %v52
  %181 = vmatpush.msra.mxu0 %v50
  %182 = vmatpush.msra.mxu0 %v48
  %183 = vmatpush.msra.mxu0 %v46
  %184 = vmatpush.msra.mxu0 %v44
  %185 = vmatpush.msra.mxu0 %v42
  %186 = vmatpush.msra.mxu0 %v40
  %187 = vmatpush.msra.mxu0 %v38
  %188 = vmatpush.msra.mxu0 %v36
  %189 = vmatpush.msra.mxu0 %v34
  %190 = vmatpush.msra.mxu0 %v32
  %191 = vmatmul.f32.gmra.mxu0 %v159
  %v192 = vpop.f32.mrf.mxu0
  %v193 = vadd.f32 0.0, %v192
  %194 = vdwg.mxu0
  %195 = vmatpush.msra.mxu0 %v63
  %196 = vmatpush.msra.mxu0 %v61
  %197 = vmatpush.msra.mxu0 %v59
  %198 = vmatpush.msra.mxu0 %v57
  %199 = vmatpush.msra.mxu0 %v55
  %200 = vmatpush.msra.mxu0 %v53
  %201 = vmatpush.msra.mxu0 %v51
  %202 = vmatpush.msra.mxu0 %v49
  %203 = vmatpush.msra.mxu0 %v47
  %204 = vmatpush.msra.mxu0 %v45
  %205 = vmatpush.msra.mxu0 %v43
  %206 = vmatpush.msra.mxu0 %v41
  %207 = vmatpush.msra.mxu0 %v39
  %208 = vmatpush.msra.mxu0 %v37
  %209 = vmatpush.msra.mxu0 %v35
  %210 = vmatpush.msra.mxu0 %v33
  %211 = vmatmul.f32.gmra.mxu0 %v159
  %v212 = vpop.f32.mrf.mxu0
  %v213 = vadd.f32 0.0, %v212
  %214 = vdwg.mxu0
  %v216 = vsel %vm110, %v174, 0
  %218 = vmatpush.msra.mxu0 0.0
  %219 = vmatpush.msra.mxu0 0.0
  %220 = vmatpush.msra.mxu0 0.0
  %221 = vmatpush.msra.mxu0 0.0
  %222 = vmatpush.msra.mxu0 0.0
  %223 = vmatpush.msra.mxu0 0.0
  %224 = vmatpush.msra.mxu0 0.0
  %225 = vmatpush.msra.mxu0 0.0
  %226 = vmatpush.msra.mxu0 0.0
  %227 = vmatpush.msra.mxu0 0.0
  %228 = vmatpush.msra.mxu0 0.0
  %229 = vmatpush.msra.mxu0 0.0
  %230 = vmatpush.msra.mxu0 0.0
  %231 = vmatpush.msra.mxu0 0.0
  %232 = vmatpush.msra.mxu0 %v30
  %233 = vmatpush.msra.mxu0 %v28
  %234 = vmatmul.f32.gmra.mxu0 %v216
  %v235 = vpop.f32.mrf.mxu0
  %v236 = vadd.f32 %v193, %v235
  %237 = vdwg.mxu0
  %238 = vmatpush.msra.mxu0 0.0
  %239 = vmatpush.msra.mxu0 0.0
  %240 = vmatpush.msra.mxu0 0.0
  %241 = vmatpush.msra.mxu0 0.0
  %242 = vmatpush.msra.mxu0 0.0
  %243 = vmatpush.msra.mxu0 0.0
  %244 = vmatpush.msra.mxu0 0.0
  %245 = vmatpush.msra.mxu0 0.0
  %246 = vmatpush.msra.mxu0 0.0
  %247 = vmatpush.msra.mxu0 0.0
  %248 = vmatpush.msra.mxu0 0.0
  %249 = vmatpush.msra.mxu0 0.0
  %250 = vmatpush.msra.mxu0 0.0
  %251 = vmatpush.msra.mxu0 0.0
  %252 = vmatpush.msra.mxu0 %v31
  %253 = vmatpush.msra.mxu0 %v29
  %254 = vmatmul.f32.gmra.mxu0 %v216
  %v255 = vpop.f32.mrf.mxu0
  %v256 = vadd.f32 %v213, %v255
  %257 = vdwg.mxu0
  %v258 = vadd.f32 %v236, %v155
  %v259 = vadd.f32 %v256, %v156
  %v260 = vsel %vm67, %v259, -1e+30
  %261 = vmax.xlane.f32.xlu0 %v260
  %v262 = vpop.xlane.xlu0 %261
  %v263 = vsub.f32 %v260, %v262
  %v264 = vmul.f32 %v263, 1.442695
  %v265 = vpow.pop %v264
  %266 = vadd.xlane.f32.xlu0 %v265
  %v267 = vpop.xlane.xlu0 %266
  %v268 = vlog2.pop %v267
  %v269 = vmul.f32 %v268, 0.6931472
  %v270 = vsub.f32 %v263, %v269
  %s271 = scalar_lea.vmem %s5, 8
  %272 = vst [vmem:[%s271] sm:$0xff] %v270
  %s273 = scalar_lea.vmem %s0, 16
  %v274 = vld [vmem:[%s273] sm:$0xff]
  %275 = vmatpush.msra.mxu0 %v62
  %276 = vmatpush.msra.mxu0 %v60
  %277 = vmatpush.msra.mxu0 %v58
  %278 = vmatpush.msra.mxu0 %v56
  %279 = vmatpush.msra.mxu0 %v54
  %280 = vmatpush.msra.mxu0 %v52
  %281 = vmatpush.msra.mxu0 %v50
  %282 = vmatpush.msra.mxu0 %v48
  %283 = vmatpush.msra.mxu0 %v46
  %284 = vmatpush.msra.mxu0 %v44
  %285 = vmatpush.msra.mxu0 %v42
  %286 = vmatpush.msra.mxu0 %v40
  %287 = vmatpush.msra.mxu0 %v38
  %288 = vmatpush.msra.mxu0 %v36
  %289 = vmatpush.msra.mxu0 %v34
  %290 = vmatpush.msra.mxu0 %v32
  %291 = vmatmul.f32.gmra.mxu0 %v258
  %v292 = vpop.f32.mrf.mxu0
  %v293 = vadd.f32 0.0, %v292
  %294 = vdwg.mxu0
  %295 = vmatpush.msra.mxu0 %v63
  %296 = vmatpush.msra.mxu0 %v61
  %297 = vmatpush.msra.mxu0 %v59
  %298 = vmatpush.msra.mxu0 %v57
  %299 = vmatpush.msra.mxu0 %v55
  %300 = vmatpush.msra.mxu0 %v53
  %301 = vmatpush.msra.mxu0 %v51
  %302 = vmatpush.msra.mxu0 %v49
  %303 = vmatpush.msra.mxu0 %v47
  %304 = vmatpush.msra.mxu0 %v45
  %305 = vmatpush.msra.mxu0 %v43
  %306 = vmatpush.msra.mxu0 %v41
  %307 = vmatpush.msra.mxu0 %v39
  %308 = vmatpush.msra.mxu0 %v37
  %309 = vmatpush.msra.mxu0 %v35
  %310 = vmatpush.msra.mxu0 %v33
  %311 = vmatmul.f32.gmra.mxu0 %v258
  %v312 = vpop.f32.mrf.mxu0
  %v313 = vadd.f32 0.0, %v312
  %314 = vdwg.mxu0
  %v316 = vsel %vm110, %v274, 0
  %318 = vmatpush.msra.mxu0 0.0
  %319 = vmatpush.msra.mxu0 0.0
  %320 = vmatpush.msra.mxu0 0.0
  %321 = vmatpush.msra.mxu0 0.0
  %322 = vmatpush.msra.mxu0 0.0
  %323 = vmatpush.msra.mxu0 0.0
  %324 = vmatpush.msra.mxu0 0.0
  %325 = vmatpush.msra.mxu0 0.0
  %326 = vmatpush.msra.mxu0 0.0
  %327 = vmatpush.msra.mxu0 0.0
  %328 = vmatpush.msra.mxu0 0.0
  %329 = vmatpush.msra.mxu0 0.0
  %330 = vmatpush.msra.mxu0 0.0
  %331 = vmatpush.msra.mxu0 0.0
  %332 = vmatpush.msra.mxu0 %v30
  %333 = vmatpush.msra.mxu0 %v28
  %334 = vmatmul.f32.gmra.mxu0 %v316
  %v335 = vpop.f32.mrf.mxu0
  %v336 = vadd.f32 %v293, %v335
  %337 = vdwg.mxu0
  %338 = vmatpush.msra.mxu0 0.0
  %339 = vmatpush.msra.mxu0 0.0
  %340 = vmatpush.msra.mxu0 0.0
  %341 = vmatpush.msra.mxu0 0.0
  %342 = vmatpush.msra.mxu0 0.0
  %343 = vmatpush.msra.mxu0 0.0
  %344 = vmatpush.msra.mxu0 0.0
  %345 = vmatpush.msra.mxu0 0.0
  %346 = vmatpush.msra.mxu0 0.0
  %347 = vmatpush.msra.mxu0 0.0
  %348 = vmatpush.msra.mxu0 0.0
  %349 = vmatpush.msra.mxu0 0.0
  %350 = vmatpush.msra.mxu0 0.0
  %351 = vmatpush.msra.mxu0 0.0
  %352 = vmatpush.msra.mxu0 %v31
  %353 = vmatpush.msra.mxu0 %v29
  %354 = vmatmul.f32.gmra.mxu0 %v316
  %v355 = vpop.f32.mrf.mxu0
  %v356 = vadd.f32 %v313, %v355
  %357 = vdwg.mxu0
  %v358 = vadd.f32 %v336, %v155
  %v359 = vadd.f32 %v356, %v156
  %v360 = vsel %vm67, %v359, -1e+30
  %361 = vmax.xlane.f32.xlu0 %v360
  %v362 = vpop.xlane.xlu0 %361
  %v363 = vsub.f32 %v360, %v362
  %v364 = vmul.f32 %v363, 1.442695
  %v365 = vpow.pop %v364
  %366 = vadd.xlane.f32.xlu0 %v365
  %v367 = vpop.xlane.xlu0 %366
  %v368 = vlog2.pop %v367
  %v369 = vmul.f32 %v368, 0.6931472
  %v370 = vsub.f32 %v363, %v369
  %s371 = scalar_lea.vmem %s5, 16
  %372 = vst [vmem:[%s371] sm:$0xff] %v370
  %s373 = scalar_lea.vmem %s0, 24
  %v374 = vld [vmem:[%s373] sm:$0xff]
  %375 = vmatpush.msra.mxu0 %v62
  %376 = vmatpush.msra.mxu0 %v60
  %377 = vmatpush.msra.mxu0 %v58
  %378 = vmatpush.msra.mxu0 %v56
  %379 = vmatpush.msra.mxu0 %v54
  %380 = vmatpush.msra.mxu0 %v52
  %381 = vmatpush.msra.mxu0 %v50
  %382 = vmatpush.msra.mxu0 %v48
  %383 = vmatpush.msra.mxu0 %v46
  %384 = vmatpush.msra.mxu0 %v44
  %385 = vmatpush.msra.mxu0 %v42
  %386 = vmatpush.msra.mxu0 %v40
  %387 = vmatpush.msra.mxu0 %v38
  %388 = vmatpush.msra.mxu0 %v36
  %389 = vmatpush.msra.mxu0 %v34
  %390 = vmatpush.msra.mxu0 %v32
  %391 = vmatmul.f32.gmra.mxu0 %v358
  %v392 = vpop.f32.mrf.mxu0
  %v393 = vadd.f32 0.0, %v392
  %394 = vdwg.mxu0
  %395 = vmatpush.msra.mxu0 %v63
  %396 = vmatpush.msra.mxu0 %v61
  %397 = vmatpush.msra.mxu0 %v59
  %398 = vmatpush.msra.mxu0 %v57
  %399 = vmatpush.msra.mxu0 %v55
  %400 = vmatpush.msra.mxu0 %v53
  %401 = vmatpush.msra.mxu0 %v51
  %402 = vmatpush.msra.mxu0 %v49
  %403 = vmatpush.msra.mxu0 %v47
  %404 = vmatpush.msra.mxu0 %v45
  %405 = vmatpush.msra.mxu0 %v43
  %406 = vmatpush.msra.mxu0 %v41
  %407 = vmatpush.msra.mxu0 %v39
  %408 = vmatpush.msra.mxu0 %v37
  %409 = vmatpush.msra.mxu0 %v35
  %410 = vmatpush.msra.mxu0 %v33
  %411 = vmatmul.f32.gmra.mxu0 %v358
  %v412 = vpop.f32.mrf.mxu0
  %v413 = vadd.f32 0.0, %v412
  %414 = vdwg.mxu0
  %v416 = vsel %vm110, %v374, 0
  %418 = vmatpush.msra.mxu0 0.0
  %419 = vmatpush.msra.mxu0 0.0
  %420 = vmatpush.msra.mxu0 0.0
  %421 = vmatpush.msra.mxu0 0.0
  %422 = vmatpush.msra.mxu0 0.0
  %423 = vmatpush.msra.mxu0 0.0
  %424 = vmatpush.msra.mxu0 0.0
  %425 = vmatpush.msra.mxu0 0.0
  %426 = vmatpush.msra.mxu0 0.0
  %427 = vmatpush.msra.mxu0 0.0
  %428 = vmatpush.msra.mxu0 0.0
  %429 = vmatpush.msra.mxu0 0.0
  %430 = vmatpush.msra.mxu0 0.0
  %431 = vmatpush.msra.mxu0 0.0
  %432 = vmatpush.msra.mxu0 %v30
  %433 = vmatpush.msra.mxu0 %v28
  %434 = vmatmul.f32.gmra.mxu0 %v416
  %v435 = vpop.f32.mrf.mxu0
  %v436 = vadd.f32 %v393, %v435
  %437 = vdwg.mxu0
  %438 = vmatpush.msra.mxu0 0.0
  %439 = vmatpush.msra.mxu0 0.0
  %440 = vmatpush.msra.mxu0 0.0
  %441 = vmatpush.msra.mxu0 0.0
  %442 = vmatpush.msra.mxu0 0.0
  %443 = vmatpush.msra.mxu0 0.0
  %444 = vmatpush.msra.mxu0 0.0
  %445 = vmatpush.msra.mxu0 0.0
  %446 = vmatpush.msra.mxu0 0.0
  %447 = vmatpush.msra.mxu0 0.0
  %448 = vmatpush.msra.mxu0 0.0
  %449 = vmatpush.msra.mxu0 0.0
  %450 = vmatpush.msra.mxu0 0.0
  %451 = vmatpush.msra.mxu0 0.0
  %452 = vmatpush.msra.mxu0 %v31
  %453 = vmatpush.msra.mxu0 %v29
  %454 = vmatmul.f32.gmra.mxu0 %v416
  %v455 = vpop.f32.mrf.mxu0
  %v456 = vadd.f32 %v413, %v455
  %457 = vdwg.mxu0
  %v458 = vadd.f32 %v436, %v155
  %v459 = vadd.f32 %v456, %v156
  %v460 = vsel %vm67, %v459, -1e+30
  %461 = vmax.xlane.f32.xlu0 %v460
  %v462 = vpop.xlane.xlu0 %461
  %v463 = vsub.f32 %v460, %v462
  %v464 = vmul.f32 %v463, 1.442695
  %v465 = vpow.pop %v464
  %466 = vadd.xlane.f32.xlu0 %v465
  %v467 = vpop.xlane.xlu0 %466
  %v468 = vlog2.pop %v467
  %v469 = vmul.f32 %v468, 0.6931472
  %v470 = vsub.f32 %v463, %v469
  %s471 = scalar_lea.vmem %s5, 24
  %472 = vst [vmem:[%s471] sm:$0xff] %v470
  %s473 = scalar_lea.vmem %s0, 32
  %v474 = vld [vmem:[%s473] sm:$0xff]
  %475 = vmatpush.msra.mxu0 %v62
  %476 = vmatpush.msra.mxu0 %v60
  %477 = vmatpush.msra.mxu0 %v58
  %478 = vmatpush.msra.mxu0 %v56
  %479 = vmatpush.msra.mxu0 %v54
  %480 = vmatpush.msra.mxu0 %v52
  %481 = vmatpush.msra.mxu0 %v50
  %482 = vmatpush.msra.mxu0 %v48
  %483 = vmatpush.msra.mxu0 %v46
  %484 = vmatpush.msra.mxu0 %v44
  %485 = vmatpush.msra.mxu0 %v42
  %486 = vmatpush.msra.mxu0 %v40
  %487 = vmatpush.msra.mxu0 %v38
  %488 = vmatpush.msra.mxu0 %v36
  %489 = vmatpush.msra.mxu0 %v34
  %490 = vmatpush.msra.mxu0 %v32
  %491 = vmatmul.f32.gmra.mxu0 %v458
  %v492 = vpop.f32.mrf.mxu0
  %v493 = vadd.f32 0.0, %v492
  %494 = vdwg.mxu0
  %495 = vmatpush.msra.mxu0 %v63
  %496 = vmatpush.msra.mxu0 %v61
  %497 = vmatpush.msra.mxu0 %v59
  %498 = vmatpush.msra.mxu0 %v57
  %499 = vmatpush.msra.mxu0 %v55
  %500 = vmatpush.msra.mxu0 %v53
  %501 = vmatpush.msra.mxu0 %v51
  %502 = vmatpush.msra.mxu0 %v49
  %503 = vmatpush.msra.mxu0 %v47
  %504 = vmatpush.msra.mxu0 %v45
  %505 = vmatpush.msra.mxu0 %v43
  %506 = vmatpush.msra.mxu0 %v41
  %507 = vmatpush.msra.mxu0 %v39
  %508 = vmatpush.msra.mxu0 %v37
  %509 = vmatpush.msra.mxu0 %v35
  %510 = vmatpush.msra.mxu0 %v33
  %511 = vmatmul.f32.gmra.mxu0 %v458
  %v512 = vpop.f32.mrf.mxu0
  %v513 = vadd.f32 0.0, %v512
  %514 = vdwg.mxu0
  %v516 = vsel %vm110, %v474, 0
  %518 = vmatpush.msra.mxu0 0.0
  %519 = vmatpush.msra.mxu0 0.0
  %520 = vmatpush.msra.mxu0 0.0
  %521 = vmatpush.msra.mxu0 0.0
  %522 = vmatpush.msra.mxu0 0.0
  %523 = vmatpush.msra.mxu0 0.0
  %524 = vmatpush.msra.mxu0 0.0
  %525 = vmatpush.msra.mxu0 0.0
  %526 = vmatpush.msra.mxu0 0.0
  %527 = vmatpush.msra.mxu0 0.0
  %528 = vmatpush.msra.mxu0 0.0
  %529 = vmatpush.msra.mxu0 0.0
  %530 = vmatpush.msra.mxu0 0.0
  %531 = vmatpush.msra.mxu0 0.0
  %532 = vmatpush.msra.mxu0 %v30
  %533 = vmatpush.msra.mxu0 %v28
  %534 = vmatmul.f32.gmra.mxu0 %v516
  %v535 = vpop.f32.mrf.mxu0
  %v536 = vadd.f32 %v493, %v535
  %537 = vdwg.mxu0
  %538 = vmatpush.msra.mxu0 0.0
  %539 = vmatpush.msra.mxu0 0.0
  %540 = vmatpush.msra.mxu0 0.0
  %541 = vmatpush.msra.mxu0 0.0
  %542 = vmatpush.msra.mxu0 0.0
  %543 = vmatpush.msra.mxu0 0.0
  %544 = vmatpush.msra.mxu0 0.0
  %545 = vmatpush.msra.mxu0 0.0
  %546 = vmatpush.msra.mxu0 0.0
  %547 = vmatpush.msra.mxu0 0.0
  %548 = vmatpush.msra.mxu0 0.0
  %549 = vmatpush.msra.mxu0 0.0
  %550 = vmatpush.msra.mxu0 0.0
  %551 = vmatpush.msra.mxu0 0.0
  %552 = vmatpush.msra.mxu0 %v31
  %553 = vmatpush.msra.mxu0 %v29
  %554 = vmatmul.f32.gmra.mxu0 %v516
  %v555 = vpop.f32.mrf.mxu0
  %v556 = vadd.f32 %v513, %v555
  %557 = vdwg.mxu0
  %v558 = vadd.f32 %v536, %v155
  %v559 = vadd.f32 %v556, %v156
  %v560 = vsel %vm67, %v559, -1e+30
  %561 = vmax.xlane.f32.xlu0 %v560
  %v562 = vpop.xlane.xlu0 %561
  %v563 = vsub.f32 %v560, %v562
  %v564 = vmul.f32 %v563, 1.442695
  %v565 = vpow.pop %v564
  %566 = vadd.xlane.f32.xlu0 %v565
  %v567 = vpop.xlane.xlu0 %566
  %v568 = vlog2.pop %v567
  %v569 = vmul.f32 %v568, 0.6931472
  %v570 = vsub.f32 %v563, %v569
  %s571 = scalar_lea.vmem %s5, 32
  %572 = vst [vmem:[%s571] sm:$0xff] %v570
  %s573 = scalar_lea.vmem %s0, 40
  %v574 = vld [vmem:[%s573] sm:$0xff]
  %575 = vmatpush.msra.mxu0 %v62
  %576 = vmatpush.msra.mxu0 %v60
  %577 = vmatpush.msra.mxu0 %v58
  %578 = vmatpush.msra.mxu0 %v56
  %579 = vmatpush.msra.mxu0 %v54
  %580 = vmatpush.msra.mxu0 %v52
  %581 = vmatpush.msra.mxu0 %v50
  %582 = vmatpush.msra.mxu0 %v48
  %583 = vmatpush.msra.mxu0 %v46
  %584 = vmatpush.msra.mxu0 %v44
  %585 = vmatpush.msra.mxu0 %v42
  %586 = vmatpush.msra.mxu0 %v40
  %587 = vmatpush.msra.mxu0 %v38
  %588 = vmatpush.msra.mxu0 %v36
  %589 = vmatpush.msra.mxu0 %v34
  %590 = vmatpush.msra.mxu0 %v32
  %591 = vmatmul.f32.gmra.mxu0 %v558
  %v592 = vpop.f32.mrf.mxu0
  %v593 = vadd.f32 0.0, %v592
  %594 = vdwg.mxu0
  %595 = vmatpush.msra.mxu0 %v63
  %596 = vmatpush.msra.mxu0 %v61
  %597 = vmatpush.msra.mxu0 %v59
  %598 = vmatpush.msra.mxu0 %v57
  %599 = vmatpush.msra.mxu0 %v55
  %600 = vmatpush.msra.mxu0 %v53
  %601 = vmatpush.msra.mxu0 %v51
  %602 = vmatpush.msra.mxu0 %v49
  %603 = vmatpush.msra.mxu0 %v47
  %604 = vmatpush.msra.mxu0 %v45
  %605 = vmatpush.msra.mxu0 %v43
  %606 = vmatpush.msra.mxu0 %v41
  %607 = vmatpush.msra.mxu0 %v39
  %608 = vmatpush.msra.mxu0 %v37
  %609 = vmatpush.msra.mxu0 %v35
  %610 = vmatpush.msra.mxu0 %v33
  %611 = vmatmul.f32.gmra.mxu0 %v558
  %v612 = vpop.f32.mrf.mxu0
  %v613 = vadd.f32 0.0, %v612
  %614 = vdwg.mxu0
  %v616 = vsel %vm110, %v574, 0
  %618 = vmatpush.msra.mxu0 0.0
  %619 = vmatpush.msra.mxu0 0.0
  %620 = vmatpush.msra.mxu0 0.0
  %621 = vmatpush.msra.mxu0 0.0
  %622 = vmatpush.msra.mxu0 0.0
  %623 = vmatpush.msra.mxu0 0.0
  %624 = vmatpush.msra.mxu0 0.0
  %625 = vmatpush.msra.mxu0 0.0
  %626 = vmatpush.msra.mxu0 0.0
  %627 = vmatpush.msra.mxu0 0.0
  %628 = vmatpush.msra.mxu0 0.0
  %629 = vmatpush.msra.mxu0 0.0
  %630 = vmatpush.msra.mxu0 0.0
  %631 = vmatpush.msra.mxu0 0.0
  %632 = vmatpush.msra.mxu0 %v30
  %633 = vmatpush.msra.mxu0 %v28
  %634 = vmatmul.f32.gmra.mxu0 %v616
  %v635 = vpop.f32.mrf.mxu0
  %v636 = vadd.f32 %v593, %v635
  %637 = vdwg.mxu0
  %638 = vmatpush.msra.mxu0 0.0
  %639 = vmatpush.msra.mxu0 0.0
  %640 = vmatpush.msra.mxu0 0.0
  %641 = vmatpush.msra.mxu0 0.0
  %642 = vmatpush.msra.mxu0 0.0
  %643 = vmatpush.msra.mxu0 0.0
  %644 = vmatpush.msra.mxu0 0.0
  %645 = vmatpush.msra.mxu0 0.0
  %646 = vmatpush.msra.mxu0 0.0
  %647 = vmatpush.msra.mxu0 0.0
  %648 = vmatpush.msra.mxu0 0.0
  %649 = vmatpush.msra.mxu0 0.0
  %650 = vmatpush.msra.mxu0 0.0
  %651 = vmatpush.msra.mxu0 0.0
  %652 = vmatpush.msra.mxu0 %v31
  %653 = vmatpush.msra.mxu0 %v29
  %654 = vmatmul.f32.gmra.mxu0 %v616
  %v655 = vpop.f32.mrf.mxu0
  %v656 = vadd.f32 %v613, %v655
  %657 = vdwg.mxu0
  %v658 = vadd.f32 %v636, %v155
  %v659 = vadd.f32 %v656, %v156
  %v660 = vsel %vm67, %v659, -1e+30
  %661 = vmax.xlane.f32.xlu0 %v660
  %v662 = vpop.xlane.xlu0 %661
  %v663 = vsub.f32 %v660, %v662
  %v664 = vmul.f32 %v663, 1.442695
  %v665 = vpow.pop %v664
  %666 = vadd.xlane.f32.xlu0 %v665
  %v667 = vpop.xlane.xlu0 %666
  %v668 = vlog2.pop %v667
  %v669 = vmul.f32 %v668, 0.6931472
  %v670 = vsub.f32 %v663, %v669
  %s671 = scalar_lea.vmem %s5, 40
  %672 = vst [vmem:[%s671] sm:$0xff] %v670
  %s673 = scalar_lea.vmem %s0, 48
  %v674 = vld [vmem:[%s673] sm:$0xff]
  %675 = vmatpush.msra.mxu0 %v62
  %676 = vmatpush.msra.mxu0 %v60
  %677 = vmatpush.msra.mxu0 %v58
  %678 = vmatpush.msra.mxu0 %v56
  %679 = vmatpush.msra.mxu0 %v54
  %680 = vmatpush.msra.mxu0 %v52
  %681 = vmatpush.msra.mxu0 %v50
  %682 = vmatpush.msra.mxu0 %v48
  %683 = vmatpush.msra.mxu0 %v46
  %684 = vmatpush.msra.mxu0 %v44
  %685 = vmatpush.msra.mxu0 %v42
  %686 = vmatpush.msra.mxu0 %v40
  %687 = vmatpush.msra.mxu0 %v38
  %688 = vmatpush.msra.mxu0 %v36
  %689 = vmatpush.msra.mxu0 %v34
  %690 = vmatpush.msra.mxu0 %v32
  %691 = vmatmul.f32.gmra.mxu0 %v658
  %v692 = vpop.f32.mrf.mxu0
  %v693 = vadd.f32 0.0, %v692
  %694 = vdwg.mxu0
  %695 = vmatpush.msra.mxu0 %v63
  %696 = vmatpush.msra.mxu0 %v61
  %697 = vmatpush.msra.mxu0 %v59
  %698 = vmatpush.msra.mxu0 %v57
  %699 = vmatpush.msra.mxu0 %v55
  %700 = vmatpush.msra.mxu0 %v53
  %701 = vmatpush.msra.mxu0 %v51
  %702 = vmatpush.msra.mxu0 %v49
  %703 = vmatpush.msra.mxu0 %v47
  %704 = vmatpush.msra.mxu0 %v45
  %705 = vmatpush.msra.mxu0 %v43
  %706 = vmatpush.msra.mxu0 %v41
  %707 = vmatpush.msra.mxu0 %v39
  %708 = vmatpush.msra.mxu0 %v37
  %709 = vmatpush.msra.mxu0 %v35
  %710 = vmatpush.msra.mxu0 %v33
  %711 = vmatmul.f32.gmra.mxu0 %v658
  %v712 = vpop.f32.mrf.mxu0
  %v713 = vadd.f32 0.0, %v712
  %714 = vdwg.mxu0
  %v716 = vsel %vm110, %v674, 0
  %718 = vmatpush.msra.mxu0 0.0
  %719 = vmatpush.msra.mxu0 0.0
  %720 = vmatpush.msra.mxu0 0.0
  %721 = vmatpush.msra.mxu0 0.0
  %722 = vmatpush.msra.mxu0 0.0
  %723 = vmatpush.msra.mxu0 0.0
  %724 = vmatpush.msra.mxu0 0.0
  %725 = vmatpush.msra.mxu0 0.0
  %726 = vmatpush.msra.mxu0 0.0
  %727 = vmatpush.msra.mxu0 0.0
  %728 = vmatpush.msra.mxu0 0.0
  %729 = vmatpush.msra.mxu0 0.0
  %730 = vmatpush.msra.mxu0 0.0
  %731 = vmatpush.msra.mxu0 0.0
  %732 = vmatpush.msra.mxu0 %v30
  %733 = vmatpush.msra.mxu0 %v28
  %734 = vmatmul.f32.gmra.mxu0 %v716
  %v735 = vpop.f32.mrf.mxu0
  %v736 = vadd.f32 %v693, %v735
  %737 = vdwg.mxu0
  %738 = vmatpush.msra.mxu0 0.0
  %739 = vmatpush.msra.mxu0 0.0
  %740 = vmatpush.msra.mxu0 0.0
  %741 = vmatpush.msra.mxu0 0.0
  %742 = vmatpush.msra.mxu0 0.0
  %743 = vmatpush.msra.mxu0 0.0
  %744 = vmatpush.msra.mxu0 0.0
  %745 = vmatpush.msra.mxu0 0.0
  %746 = vmatpush.msra.mxu0 0.0
  %747 = vmatpush.msra.mxu0 0.0
  %748 = vmatpush.msra.mxu0 0.0
  %749 = vmatpush.msra.mxu0 0.0
  %750 = vmatpush.msra.mxu0 0.0
  %751 = vmatpush.msra.mxu0 0.0
  %752 = vmatpush.msra.mxu0 %v31
  %753 = vmatpush.msra.mxu0 %v29
  %754 = vmatmul.f32.gmra.mxu0 %v716
  %v755 = vpop.f32.mrf.mxu0
  %v756 = vadd.f32 %v713, %v755
  %757 = vdwg.mxu0
  %v758 = vadd.f32 %v736, %v155
  %v759 = vadd.f32 %v756, %v156
  %v760 = vsel %vm67, %v759, -1e+30
  %761 = vmax.xlane.f32.xlu0 %v760
  %v762 = vpop.xlane.xlu0 %761
  %v763 = vsub.f32 %v760, %v762
  %v764 = vmul.f32 %v763, 1.442695
  %v765 = vpow.pop %v764
  %766 = vadd.xlane.f32.xlu0 %v765
  %v767 = vpop.xlane.xlu0 %766
  %v768 = vlog2.pop %v767
  %v769 = vmul.f32 %v768, 0.6931472
  %v770 = vsub.f32 %v763, %v769
  %s771 = scalar_lea.vmem %s5, 48
  %772 = vst [vmem:[%s771] sm:$0xff] %v770
  %s773 = scalar_lea.vmem %s0, 56
  %v774 = vld [vmem:[%s773] sm:$0xff]
  %775 = vmatpush.msra.mxu0 %v62
  %776 = vmatpush.msra.mxu0 %v60
  %777 = vmatpush.msra.mxu0 %v58
  %778 = vmatpush.msra.mxu0 %v56
  %779 = vmatpush.msra.mxu0 %v54
  %780 = vmatpush.msra.mxu0 %v52
  %781 = vmatpush.msra.mxu0 %v50
  %782 = vmatpush.msra.mxu0 %v48
  %783 = vmatpush.msra.mxu0 %v46
  %784 = vmatpush.msra.mxu0 %v44
  %785 = vmatpush.msra.mxu0 %v42
  %786 = vmatpush.msra.mxu0 %v40
  %787 = vmatpush.msra.mxu0 %v38
  %788 = vmatpush.msra.mxu0 %v36
  %789 = vmatpush.msra.mxu0 %v34
  %790 = vmatpush.msra.mxu0 %v32
  %791 = vmatmul.f32.gmra.mxu0 %v758
  %v792 = vpop.f32.mrf.mxu0
  %v793 = vadd.f32 0.0, %v792
  %794 = vdwg.mxu0
  %795 = vmatpush.msra.mxu0 %v63
  %796 = vmatpush.msra.mxu0 %v61
  %797 = vmatpush.msra.mxu0 %v59
  %798 = vmatpush.msra.mxu0 %v57
  %799 = vmatpush.msra.mxu0 %v55
  %800 = vmatpush.msra.mxu0 %v53
  %801 = vmatpush.msra.mxu0 %v51
  %802 = vmatpush.msra.mxu0 %v49
  %803 = vmatpush.msra.mxu0 %v47
  %804 = vmatpush.msra.mxu0 %v45
  %805 = vmatpush.msra.mxu0 %v43
  %806 = vmatpush.msra.mxu0 %v41
  %807 = vmatpush.msra.mxu0 %v39
  %808 = vmatpush.msra.mxu0 %v37
  %809 = vmatpush.msra.mxu0 %v35
  %810 = vmatpush.msra.mxu0 %v33
  %811 = vmatmul.f32.gmra.mxu0 %v758
  %v812 = vpop.f32.mrf.mxu0
  %v813 = vadd.f32 0.0, %v812
  %814 = vdwg.mxu0
  %v816 = vsel %vm110, %v774, 0
  %818 = vmatpush.msra.mxu0 0.0
  %819 = vmatpush.msra.mxu0 0.0
  %820 = vmatpush.msra.mxu0 0.0
  %821 = vmatpush.msra.mxu0 0.0
  %822 = vmatpush.msra.mxu0 0.0
  %823 = vmatpush.msra.mxu0 0.0
  %824 = vmatpush.msra.mxu0 0.0
  %825 = vmatpush.msra.mxu0 0.0
  %826 = vmatpush.msra.mxu0 0.0
  %827 = vmatpush.msra.mxu0 0.0
  %828 = vmatpush.msra.mxu0 0.0
  %829 = vmatpush.msra.mxu0 0.0
  %830 = vmatpush.msra.mxu0 0.0
  %831 = vmatpush.msra.mxu0 0.0
  %832 = vmatpush.msra.mxu0 %v30
  %833 = vmatpush.msra.mxu0 %v28
  %834 = vmatmul.f32.gmra.mxu0 %v816
  %v835 = vpop.f32.mrf.mxu0
  %v836 = vadd.f32 %v793, %v835
  %837 = vdwg.mxu0
  %838 = vmatpush.msra.mxu0 0.0
  %839 = vmatpush.msra.mxu0 0.0
  %840 = vmatpush.msra.mxu0 0.0
  %841 = vmatpush.msra.mxu0 0.0
  %842 = vmatpush.msra.mxu0 0.0
  %843 = vmatpush.msra.mxu0 0.0
  %844 = vmatpush.msra.mxu0 0.0
  %845 = vmatpush.msra.mxu0 0.0
  %846 = vmatpush.msra.mxu0 0.0
  %847 = vmatpush.msra.mxu0 0.0
  %848 = vmatpush.msra.mxu0 0.0
  %849 = vmatpush.msra.mxu0 0.0
  %850 = vmatpush.msra.mxu0 0.0
  %851 = vmatpush.msra.mxu0 0.0
  %852 = vmatpush.msra.mxu0 %v31
  %853 = vmatpush.msra.mxu0 %v29
  %854 = vmatmul.f32.gmra.mxu0 %v816
  %v855 = vpop.f32.mrf.mxu0
  %v856 = vadd.f32 %v813, %v855
  %857 = vdwg.mxu0
  %v858 = vadd.f32 %v836, %v155
  %v859 = vadd.f32 %v856, %v156
  %v860 = vsel %vm67, %v859, -1e+30
  %861 = vmax.xlane.f32.xlu0 %v860
  %v862 = vpop.xlane.xlu0 %861
  %v863 = vsub.f32 %v860, %v862
  %v864 = vmul.f32 %v863, 1.442695
  %v865 = vpow.pop %v864
  %866 = vadd.xlane.f32.xlu0 %v865
  %v867 = vpop.xlane.xlu0 %866
  %v868 = vlog2.pop %v867
  %v869 = vmul.f32 %v868, 0.6931472
  %v870 = vsub.f32 %v863, %v869
  %s871 = scalar_lea.vmem %s5, 56
  %872 = vst [vmem:[%s871] sm:$0xff] %v870
  %873 = vst [vmem:[%s6] sm:$0xff] %v858
  // Predicated region
  $region26: #{rnn_sequence_forward.1} parent=0 // pred_check
    _
  $region27: #{rnn_sequence_forward.1} parent=0 // pred_check_branch
    %875 = sbr.rel (0) target = $region29
  $region28: #{rnn_sequence_forward.1} parent=0 // pred_region
    _
  $region29: #{rnn_sequence_forward.1} parent=0 // pred_fallthru
    _
  // Predicated region
  $region30: #{rnn_sequence_forward.1} parent=0 // pred_check
    _
  $region31: #{rnn_sequence_forward.1} parent=0 // pred_check_branch
    %877 = sbr.rel (0) target = $region33
  $region32: #{rnn_sequence_forward.1} parent=0 // pred_region
    _
  $region33: #{rnn_sequence_forward.1} parent=0 // pred_fallthru
    _
  // Predicated region
  $region34: #{rnn_sequence_forward.1} parent=0 // pred_check
    _
  $region35: #{rnn_sequence_forward.1} parent=0 // pred_check_branch
    %879 = sbr.rel (0) target = $region37
  $region36: #{rnn_sequence_forward.1} parent=0 // pred_region
    _
  $region37: #{rnn_sequence_forward.1} parent=0 // pred_fallthru
    _
  // Predicated region
  $region38: #{rnn_sequence_forward.1} parent=0 // pred_check
    _
  $region39: #{rnn_sequence_forward.1} parent=0 // pred_check_branch
    %881 = sbr.rel (0) target = $region41
  $region40: #{rnn_sequence_forward.1} parent=0 // pred_region
    _
  $region41: #{rnn_sequence_forward.1} parent=0 // pred_fallthru
    _

</llo_original>
